<compile_context>
chip_gen: v7x
topology: tpu7x:2x2x1
jax: 0.10.0
libtpu: 0.0.40
codegen_flags: <defaults>
</compile_context>

<pallas_src>
import functools

import jax
import jax.numpy as jnp
from jax.experimental import pallas as pl
from jax.experimental.pallas import tpu as pltpu

ALPHA = 1.0
GAMMA = 2.0  # gamma == 2 is implemented as an explicit square below.


def _focal_loss_kernel(n_rows, tile_rows, x_ref, t_ref, out_ref):
    # x_ref: (TN, C) logits, t_ref: (TN, 1) int32 targets,
    # out_ref: (1, 8, 128) lane-dense partial-sum slab for this tile.
    x = x_ref[...].astype(jnp.float32)                      # (TN, C)
    t = t_ref[...]                                          # (TN, 1)

    # Numerically-stable log-softmax pieces; exp(x - m) is computed once and reused
    # for both the softmax denominator and pt (no second exp(-ce) on the EUP).
    m = jnp.max(x, axis=-1, keepdims=True)                  # (TN, 1)
    xm = x - m                                              # (TN, C)
    e = jnp.exp(xm)                                         # (TN, C)
    s = jnp.sum(e, axis=-1, keepdims=True)                  # (TN, 1)

    cls_ids = jax.lax.broadcasted_iota(jnp.int32, x.shape, 1)
    tmask = cls_ids == t                                    # (TN, C) one-hot mask
    logit_shift = jnp.sum(jnp.where(tmask, xm, 0.0), axis=-1, keepdims=True)  # x_t - m
    num = jnp.sum(jnp.where(tmask, e, 0.0), axis=-1, keepdims=True)           # exp(x_t - m)

    ce = jnp.log(s) - logit_shift                           # cross-entropy, stable
    pt = num / s                                            # == exp(-ce), reuses e

    one_minus_pt = 1.0 - pt
    focal = ALPHA * (one_minus_pt * one_minus_pt) * ce      # gamma = 2

    # Mask padded rows of the ragged last tile before reducing.
    row_ids = pl.program_id(0) * tile_rows + jax.lax.broadcasted_iota(
        jnp.int32, (focal.shape[0], 1), 0)
    focal = jnp.where(row_ids < n_rows, focal, 0.0)

    psum = jnp.sum(focal, axis=0, keepdims=True)            # (1, 1)
    # Lane-dense, unmasked store (avoids a 1-wide masked vst path).
    out_ref[...] = jnp.broadcast_to(psum[None, :, :], (1, 8, 128))


def focal_loss(inputs, targets, tile_rows=None):
    """inputs: (N, C) float logits, targets: (N,) int class indices -> scalar f32 loss."""
    n, c = inputs.shape
    t2d = targets.astype(jnp.int32).reshape(n, 1)

    if tile_rows is None:
        # ~4 MiB f32 logits block per buffer => ~8 MiB double-buffered; comfortably
        # inside the default scoped-VMEM budget on v5e/v6e/v7x.
        tile_rows = (4 * 1024 * 1024) // (c * 4)
        tile_rows = max(8, (tile_rows // 8) * 8)
        tile_rows = min(tile_rows, 1024)
    if n <= tile_rows:
        tile_rows = n                 # single tile; full-extent block is always legal
    num_tiles = pl.cdiv(n, tile_rows)

    # TODO(synk): for very large C (a full-C block would not fit VMEM) add an inner
    # "arbitrary" grid axis over classes with an online max/sum; not needed here.
    kernel = functools.partial(_focal_loss_kernel, n, tile_rows)

    partials = pl.pallas_call(
        kernel,
        out_shape=jax.ShapeDtypeStruct((num_tiles, 8, 128), jnp.float32),
        grid=(num_tiles,),
        in_specs=[
            pl.BlockSpec((tile_rows, c), lambda i: (i, 0)),
            pl.BlockSpec((tile_rows, 1), lambda i: (i, 0)),
        ],
        out_specs=pl.BlockSpec((1, 8, 128), lambda i: (i, 0, 0)),
        compiler_params=pltpu.CompilerParams(
            dimension_semantics=("parallel",)),
    )(inputs, t2d)

    # Each tile's slab holds its partial sum replicated; pick one element per tile.
    return jnp.sum(partials[:, 0, 0]) / jnp.float32(n)


def _reference(inputs, targets):
    logp = jax.nn.log_softmax(inputs.astype(jnp.float32), axis=-1)
    ce = -jnp.take_along_axis(logp, targets[:, None].astype(jnp.int32), axis=-1)[:, 0]
    pt = jnp.exp(-ce)
    return jnp.mean(ALPHA * (1.0 - pt) ** GAMMA * ce)


if __name__ == "__main__":
    key = jax.random.PRNGKey(0)
    k1, k2, k3, k4 = jax.random.split(key, 4)

    # Small shape consistent with the module: (batch, num_classes) logits + int targets.
    N, C = 16, 8
    logits = jax.random.normal(k1, (N, C), dtype=jnp.float32)
    targets = jax.random.randint(k2, (N,), 0, C, dtype=jnp.int32)

    loss = jax.block_until_ready(focal_loss(logits, targets))
    ref = _reference(logits, targets)
    assert jnp.allclose(loss, ref, rtol=1e-5, atol=1e-6), (loss, ref)

    # Multi-tile + ragged-last-tile path (exercises the padded-row mask).
    N2, C2 = 300, 8
    logits2 = jax.random.normal(k3, (N2, C2), dtype=jnp.float32)
    targets2 = jax.random.randint(k4, (N2,), 0, C2, dtype=jnp.int32)
    loss2 = jax.block_until_ready(focal_loss(logits2, targets2, tile_rows=128))
    ref2 = _reference(logits2, targets2)
    assert jnp.allclose(loss2, ref2, rtol=1e-5, atol=1e-6), (loss2, ref2)

    print("KERNEL_OK")
</pallas_src>

<mosaic_0001>
module attributes {stable_mosaic.version = 11 : i64} {
  func.func @_focal_loss_kernel(%arg0: i32, %arg1: memref<16x8xf32, #tpu.memory_space<vmem>>, %arg2: memref<16x1xi32, #tpu.memory_space<vmem>>, %arg3: memref<1x8x128xf32, #tpu.memory_space<vmem>>) attributes {dimension_semantics = [#tpu.dimension_semantics<parallel>], iteration_bounds = array<i64: 1>, scalar_prefetch = 0 : i64, scratch_operands = 0 : i64, tpu.core_type = #tpu.core_type<tc>, window_params = [{transform_indices = @transform_0, window_bounds = array<i64: 16, 8>}, {transform_indices = @transform_1, window_bounds = array<i64: 16, 1>}, {transform_indices = @transform_2, window_bounds = array<i64: 1, 8, 128>}]} {
    %c0 = arith.constant 0 : index
    %c0_0 = arith.constant 0 : index
    %0 = vector.load %arg1[%c0, %c0_0] : memref<16x8xf32, #tpu.memory_space<vmem>>, vector<16x8xf32>
    %c0_1 = arith.constant 0 : index
    %c0_2 = arith.constant 0 : index
    %1 = vector.load %arg2[%c0_1, %c0_2] : memref<16x1xi32, #tpu.memory_space<vmem>>, vector<16x1xi32>
    %cst = arith.constant dense<0xFF800000> : vector<16xf32>
    %2 = vector.multi_reduction <maximumf>, %0, %cst [1] : vector<16x8xf32> to vector<16xf32>
    %3 = vector.shape_cast %2 : vector<16xf32> to vector<16x1xf32>
    %4 = vector.broadcast %3 : vector<16x1xf32> to vector<16x8xf32>
    %5 = arith.subf %0, %4 : vector<16x8xf32>
    %6 = math.exp %5 : vector<16x8xf32>
    %cst_3 = arith.constant dense<0.000000e+00> : vector<16xf32>
    %7 = vector.multi_reduction <add>, %6, %cst_3 [1] : vector<16x8xf32> to vector<16xf32>
    %8 = vector.shape_cast %7 : vector<16xf32> to vector<16x1xf32>
    %9 = tpu.iota {dimensions = array<i32: 1>} : vector<16x8xi32>
    %10 = vector.broadcast %1 : vector<16x1xi32> to vector<16x8xi32>
    %11 = arith.cmpi eq, %9, %10 : vector<16x8xi32>
    %cst_4 = arith.constant 0.000000e+00 : f32
    %12 = vector.broadcast %cst_4 : f32 to vector<16x8xf32>
    %13 = arith.select %11, %5, %12 : vector<16x8xi1>, vector<16x8xf32>
    %cst_5 = arith.constant dense<0.000000e+00> : vector<16xf32>
    %14 = vector.multi_reduction <add>, %13, %cst_5 [1] : vector<16x8xf32> to vector<16xf32>
    %15 = vector.shape_cast %14 : vector<16xf32> to vector<16x1xf32>
    %cst_6 = arith.constant 0.000000e+00 : f32
    %16 = vector.broadcast %cst_6 : f32 to vector<16x8xf32>
    %17 = arith.select %11, %6, %16 : vector<16x8xi1>, vector<16x8xf32>
    %cst_7 = arith.constant dense<0.000000e+00> : vector<16xf32>
    %18 = vector.multi_reduction <add>, %17, %cst_7 [1] : vector<16x8xf32> to vector<16xf32>
    %19 = vector.shape_cast %18 : vector<16xf32> to vector<16x1xf32>
    %20 = math.log %8 : vector<16x1xf32>
    %21 = arith.subf %20, %15 : vector<16x1xf32>
    %22 = arith.divf %19, %8 : vector<16x1xf32>
    %cst_8 = arith.constant 1.000000e+00 : f32
    %23 = vector.broadcast %cst_8 : f32 to vector<16x1xf32>
    %24 = arith.subf %23, %22 : vector<16x1xf32>
    %25 = arith.mulf %24, %24 : vector<16x1xf32>
    %cst_9 = arith.constant 1.000000e+00 : f32
    %26 = vector.broadcast %cst_9 : f32 to vector<16x1xf32>
    %27 = arith.mulf %26, %25 : vector<16x1xf32>
    %28 = arith.mulf %27, %21 : vector<16x1xf32>
    %c16_i32 = arith.constant 16 : i32
    %29 = arith.muli %arg0, %c16_i32 : i32
    %30 = tpu.iota {dimensions = array<i32: 0>} : vector<16x1xi32>
    %31 = vector.broadcast %29 : i32 to vector<16x1xi32>
    %32 = arith.addi %31, %30 : vector<16x1xi32>
    %c16_i32_10 = arith.constant 16 : i32
    %33 = vector.broadcast %c16_i32_10 : i32 to vector<16x1xi32>
    %34 = arith.cmpi slt, %32, %33 : vector<16x1xi32>
    %cst_11 = arith.constant 0.000000e+00 : f32
    %35 = vector.broadcast %cst_11 : f32 to vector<16x1xf32>
    %36 = arith.select %34, %28, %35 : vector<16x1xi1>, vector<16x1xf32>
    %cst_12 = arith.constant dense<0.000000e+00> : vector<1xf32>
    %37 = vector.multi_reduction <add>, %36, %cst_12 [0] : vector<16x1xf32> to vector<1xf32>
    %38 = vector.shape_cast %37 : vector<1xf32> to vector<1x1xf32>
    %39 = vector.shape_cast %38 : vector<1x1xf32> to vector<1x1x1xf32>
    %40 = vector.shape_cast %39 : vector<1x1x1xf32> to vector<1x1x1xf32>
    %41 = vector.broadcast %40 : vector<1x1x1xf32> to vector<1x8x128xf32>
    %c0_13 = arith.constant 0 : index
    %c0_14 = arith.constant 0 : index
    %c0_15 = arith.constant 0 : index
    %42 = vector.load %arg3[%c0_13, %c0_14, %c0_15] : memref<1x8x128xf32, #tpu.memory_space<vmem>>, vector<1x8x128xf32>
    tpu.vector_store %arg3[%c0_13, %c0_14, %c0_15], %41 {strides = array<i32>} : memref<1x8x128xf32, #tpu.memory_space<vmem>>, vector<1x8x128xf32>,
    return
  }
  func.func @transform_0(%arg0: i32) -> (i32, i32) {
    %c0_i32 = arith.constant 0 : i32
    %c0_i32_0 = arith.constant 0 : i32
    return %arg0, %c0_i32 : i32, i32
  }
  func.func @transform_1(%arg0: i32) -> (i32, i32) {
    %c0_i32 = arith.constant 0 : i32
    %c0_i32_0 = arith.constant 0 : i32
    return %arg0, %c0_i32 : i32, i32
  }
  func.func @transform_2(%arg0: i32) -> (i32, i32, i32) {
    %c0_i32 = arith.constant 0 : i32
    %c0_i32_0 = arith.constant 0 : i32
    %c0_i32_1 = arith.constant 0 : i32
    return %arg0, %c0_i32, %c0_i32_0 : i32, i32, i32
  }
}

</mosaic_0001>

<llo_original>
// kernel: tpu_custom_call.1
$region0: #{tpu_custom_call.1}
  #allocation0 [shape = 'u32[]', space=smem, size = 0x4, offset = 0x4, fixed_abs, tag = 'smem constant byte address 0x4 - core index']
  #allocation1 [shape = 'u32[144,128]{1,0:T(1,128)}', space=vmem, size = 0x12000, scoped, tag = 'internal scratch']
  %s0 = inlined_call_operand.vmem [shape: f32[16,8], index: 0, kind: input, shape index: {}]
  %s1 = inlined_call_operand.vmem [shape: s32[16,1], index: 1, kind: input, shape index: {}]
  %s2 = inlined_call_operand.hbm [shape: f32[1,8,128], index: 2, kind: output, shape index: {}]
  %s3 = sld [smem:[#allocation0]]
  $region18: #{tpu_custom_call.1} parent=0
    _
  %s5 = ssub.s32 1, %s3
  %s6 = scalar_select 0, %s5, %s3
  $region1: #{tpu_custom_call.1} parent=0
    #allocation2 [shape = 'u8[4096]{0}', space=vmem, size = 0x1000, scoped, tag = 'output window, operand 0, single buffered']
    #allocation3 [shape = 's32[1]{0}', space=sflag, size = 0x4, scoped, tag = 'scoped memory for tpu_custom_call.1']
    %7 = vsyncpa [#allocation3], 0
    // Predicated region
    $region2: #{tpu_custom_call.1} parent=1 // pred_check
      _
    $region3: #{tpu_custom_call.1} parent=1 // pred_check_branch
      %9 = sbr.rel (0) target = $region5
    $region4: #{tpu_custom_call.1} parent=1 // pred_region
      _
    $region5: #{tpu_custom_call.1} parent=1 // pred_fallthru
      _
    // Predicated region
    $region6: #{tpu_custom_call.1} parent=1 // pred_check
      _
    $region7: #{tpu_custom_call.1} parent=1 // pred_check_branch
      %11 = sbr.rel (0) target = $region9
    $region8: #{tpu_custom_call.1} parent=1 // pred_region
      _
    $region9: #{tpu_custom_call.1} parent=1 // pred_fallthru
      _
    %v12 = vld [vmem:[%s0] sm:$0xff]
    %v13 = vld [vmem:[%s0 + $0x8] sm:$0xff]
    %v14 = vld [vmem:[%s1] sm:$0xff]
    %v15 = vld [vmem:[%s1 + $0x8] sm:$0xff]
    %vm16 = vcmask 64512
    %v17 = vsel %vm16, %v12, -inf
    %18 = vmax.xlane.f32.xlu0 %v17
    %v19 = vpop.xlane.xlu0 %18
    %v20 = vsel %vm16, %v13, -inf
    %21 = vmax.xlane.f32.xlu0 %v20
    %v22 = vpop.xlane.xlu0 %21
    %v23 = vsub.f32 %v12, %v19
    %v24 = vsub.f32 %v13, %v22
    %v25 = vmul.f32 %v23, 1.442695
    %v26 = vpow.pop %v25
    %v27 = vmul.f32 %v24, 1.442695
    %v28 = vpow.pop %v27
    %v29 = vsel %vm16, %v26, 0.0
    %30 = vadd.xlane.f32.xlu0 %v29
    %v31 = vpop.xlane.xlu0 %30
    %v32 = vsel %vm16, %v28, 0.0
    %33 = vadd.xlane.f32.xlu0 %v32
    %v34 = vpop.xlane.xlu0 %33
    %v35 = vlaneseq
    %v36 = vand.u32 %v35, 127
    %37 = vset.pattern.permute.xlu0 0
    %38 = vperm.xlu0 %37, %v14
    %v39 = vpop.permute.xlu0 %38
    %40 = vset.pattern.permute.xlu0 0
    %41 = vperm.xlu0 %40, %v15
    %v42 = vpop.permute.xlu0 %41
    %vm43 = vcmp.eq.s32.totalorder %v36, %v39
    %vm44 = vcmp.eq.s32.totalorder %v36, %v42
    %v45 = vsel %vm43, %v23, 0.0
    %v46 = vsel %vm44, %v24, 0.0
    %v47 = vsel %vm16, %v45, 0.0
    %48 = vadd.xlane.f32.xlu0 %v47
    %v49 = vpop.xlane.xlu0 %48
    %v50 = vsel %vm16, %v46, 0.0
    %51 = vadd.xlane.f32.xlu0 %v50
    %v52 = vpop.xlane.xlu0 %51
    %v53 = vsel %vm43, %v26, 0.0
    %v54 = vsel %vm44, %v28, 0.0
    %v55 = vsel %vm16, %v53, 0.0
    %56 = vadd.xlane.f32.xlu0 %v55
    %v57 = vpop.xlane.xlu0 %56
    %v58 = vsel %vm16, %v54, 0.0
    %59 = vadd.xlane.f32.xlu0 %v58
    %v60 = vpop.xlane.xlu0 %59
    %v61 = vlog2.pop %v31
    %v62 = vmul.f32 %v61, 0.6931472
    %v63 = vlog2.pop %v34
    %v64 = vmul.f32 %v63, 0.6931472
    %v65 = vsub.f32 %v62, %v49
    %v66 = vsub.f32 %v64, %v52
    %v67 = vrcp.pop %v31
    %v68 = vmul.f32 %v57, %v67
    %v69 = vrcp.pop %v34
    %v70 = vmul.f32 %v60, %v69
    %v71 = vsub.f32 1.0, %v68
    %v72 = vsub.f32 1.0, %v70
    %v73 = vmul.f32 %v71, %v71
    %v74 = vmul.f32 %v72, %v72
    %v75 = vmul.f32 %v73, %v65
    %v76 = vmul.f32 %v74, %v66
    %s77 = smul.u32 0, 16
    %v78 = vlaneseq
    %v79 = vshrl.u32 %v78, 7
    %v80 = vadd.s32 %v79, 8
    %v81 = vstv %s77
    %v82 = vadd.s32 %v81, %v79
    %v83 = vadd.s32 %v81, %v80
    %vm84 = vcmp.lt.s32.totalorder %v82, 16
    %vm85 = vcmp.lt.s32.totalorder %v83, 16
    %v86 = vsel %vm84, %v75, 0.0
    %v87 = vsel %vm85, %v76, 0.0
    %v88 = vadd.f32 %v86, %v87
    %v89 = vrot.slane %v88, 4
    %v90 = vadd.f32 %v88, %v89
    %v91 = vrot.slane %v90, 2
    %v92 = vadd.f32 %v90, %v91
    %v93 = vrot.slane %v92, 1
    %v94 = vadd.f32 %v92, %v93
    %95 = vst [vmem:[#allocation2] sm:$0xff] %v94
    // Predicated region
    $region10: #{tpu_custom_call.1} parent=1 // pred_check
      _
    $region11: #{tpu_custom_call.1} parent=1 // pred_check_branch
      %97 = sbr.rel (0) target = $region13
    $region12: #{tpu_custom_call.1} parent=1 // pred_region
      %s99 = ssub.s32 128, 128
      %100 = vsyncadd [#allocation3], %s99
      %s102 = sshll.u32 [#allocation2], 4
      %s103 = int_to_ptr.vmem [resolvable:$true] %s102
      %105 = dma.vmem_to_hbm [thread:$0]  %s103, 128, %s2, [#allocation3]
    $region13: #{tpu_custom_call.1} parent=1 // pred_fallthru
      _
    // Predicated region
    $region14: #{tpu_custom_call.1} parent=1 // pred_check
      _
    $region15: #{tpu_custom_call.1} parent=1 // pred_check_branch
      %107 = sbr.rel (0) target = $region17
    $region16: #{tpu_custom_call.1} parent=1 // pred_region
      %108 = dma.done [#allocation3], 128
    $region17: #{tpu_custom_call.1} parent=1 // pred_fallthru
      _
    %109 = vsyncpa [#allocation3], 1

</llo_original>
